<compile_context>
chip_gen: v7x
topology: tpu7x:2x2x1
jax: 0.10.0
libtpu: 0.0.40
codegen_flags: <defaults>
</compile_context>

<pallas_src>
import jax
import jax.numpy as jnp
from jax.experimental import pallas as pl
from jax.experimental.pallas import tpu as pltpu

HIDDEN = 64


def _round_up(n, m):
    return (n + m - 1) // m * m


def _mlp_kernel(x_ref, *refs):
    # Fused 4-layer MLP on one batch tile.
    #   x_ref: (tile, d_in)
    #   refs:  w1, b1, w2, b2, w3, b3, w4, b4, o_ref
    # Matmuls hit the MXU (f32 accumulation); bias-add / ReLU on the VPU.
    *wb_refs, o_ref = refs
    n_layers = len(wb_refs) // 2
    cdt = wb_refs[0].dtype                      # MXU feed dtype (e.g. bf16)
    h = x_ref[...].astype(cdt)
    for l in range(n_layers):
        w_ref = wb_refs[2 * l]
        b_ref = wb_refs[2 * l + 1]              # f32 bias, added post-acc
        h = jnp.dot(h, w_ref[...], preferred_element_type=jnp.float32) + b_ref[...]
        if l < n_layers - 1:
            h = jnp.maximum(h, 0.0).astype(cdt)
    o_ref[...] = h.astype(o_ref.dtype)


def prepare_params(params, compute_dtype=jnp.bfloat16):
    """Hoist the per-call weight cast: do it once at param-setup time."""
    cdt = jnp.dtype(compute_dtype)
    return tuple((w.astype(cdt), b.astype(jnp.float32)) for (w, b) in params)


def reg_set_forward(x, params, *, batch_tile=1024, compute_dtype=jnp.bfloat16):
    """Pallas implementation of regSet.forward (the MLP self.f).

    compute_dtype: dtype fed to the MXU (default bf16). Accumulation is
    always f32; biases stay f32; output is returned in x.dtype.
    """
    n, d_in = x.shape
    d_out = params[-1][0].shape[1]
    assert params[0][0].shape[0] == d_in

    cdt = jnp.dtype(compute_dtype)
    # astype is a no-op if the caller already ran prepare_params(..., cdt).
    params_c = [(w.astype(cdt), b.astype(jnp.float32)) for (w, b) in params]

    # Batch tiling: multiple of 8; aim for >= 2 grid blocks (v7x megacore)
    # whenever the batch allows it. Ragged last block is clipped by Pallas —
    # no batch padding, no extra HBM pass.
    tile = min(_round_up(max(batch_tile, 8), 8),
               max(8, _round_up(-(-n // 2), 8)))
    grid = (pl.cdiv(n, tile),)

    in_specs = [pl.BlockSpec((tile, d_in), lambda i: (i, 0))]   # x: streamed
    flat_wb = []
    for (w, b) in params_c:
        in_specs.append(pl.BlockSpec(w.shape, lambda i: (0, 0)))  # resident
        in_specs.append(pl.BlockSpec(b.shape, lambda i: (0, 0)))  # resident
        flat_wb += [w, b]

    out = pl.pallas_call(
        _mlp_kernel,
        out_shape=jax.ShapeDtypeStruct((n, d_out), x.dtype),
        grid_spec=pltpu.PrefetchScalarGridSpec(
            num_scalar_prefetch=0,
            grid=grid,
            in_specs=in_specs,
            out_specs=pl.BlockSpec((tile, d_out), lambda i: (i, 0)),
        ),
        compiler_params=pltpu.CompilerParams(
            dimension_semantics=("parallel",)),
    )(x, *flat_wb)
    return out


def init_params(key, input_dim):
    """Deterministic init of the 4 Linear layers (PyTorch-like uniform)."""
    dims = [(input_dim, HIDDEN), (HIDDEN, HIDDEN), (HIDDEN, HIDDEN), (HIDDEN, input_dim)]
    params = []
    for (fan_in, fan_out) in dims:
        key, kw, kb = jax.random.split(key, 3)
        bound = 1.0 / jnp.sqrt(fan_in)
        w = jax.random.uniform(kw, (fan_in, fan_out), jnp.float32, -bound, bound)
        b = jax.random.uniform(kb, (1, fan_out), jnp.float32, -bound, bound)
        params.append((w, b))
    return params


def reg_set_forward_ref(x, params):
    h = x
    for i, (w, b) in enumerate(params):
        h = h @ w + b
        if i < len(params) - 1:
            h = jnp.maximum(h, 0.0)
    return h


if __name__ == "__main__":
    key = jax.random.PRNGKey(0)
    k_x, k_x2, k_p = jax.random.split(key, 3)

    input_dim = 32
    params = init_params(k_p, input_dim)
    params_bf16 = prepare_params(params, jnp.bfloat16)   # hoisted cast

    # Two batch sizes, both NOT multiples of 8 -> exercise the ragged last
    # block and the >=2-grid-block tiling rule.
    for batch, kx in ((10, k_x), (200, k_x2)):
        x = jax.random.normal(kx, (batch, input_dim), jnp.float32)
        y_ref = reg_set_forward_ref(x, params)

        # Default path: bf16-fed MXU, f32 accumulation, f32 biases/output.
        y_bf16 = jax.block_until_ready(reg_set_forward(x, params_bf16))
        assert y_bf16.shape == (batch, input_dim)
        assert jnp.allclose(y_bf16, y_ref, atol=1e-1, rtol=1e-1), \
            f"bf16 mismatch vs reference (batch={batch})"

        # f32 path: tight check against the pure-JAX reference.
        y_f32 = jax.block_until_ready(
            reg_set_forward(x, params, compute_dtype=jnp.float32))
        assert y_f32.shape == (batch, input_dim)
        assert jnp.allclose(y_f32, y_ref, atol=2e-5, rtol=2e-5), \
            f"f32 mismatch vs reference (batch={batch})"

    print("KERNEL_OK")
</pallas_src>

<mosaic_0001>
module attributes {stable_mosaic.version = 11 : i64} {
  func.func @_mlp_kernel(%arg0: i32, %arg1: memref<8x32xf32, #tpu.memory_space<vmem>>, %arg2: memref<32x64xbf16, #tpu.memory_space<vmem>>, %arg3: memref<1x64xf32, #tpu.memory_space<vmem>>, %arg4: memref<64x64xbf16, #tpu.memory_space<vmem>>, %arg5: memref<1x64xf32, #tpu.memory_space<vmem>>, %arg6: memref<64x64xbf16, #tpu.memory_space<vmem>>, %arg7: memref<1x64xf32, #tpu.memory_space<vmem>>, %arg8: memref<64x32xbf16, #tpu.memory_space<vmem>>, %arg9: memref<1x32xf32, #tpu.memory_space<vmem>>, %arg10: memref<8x32xf32, #tpu.memory_space<vmem>>) attributes {dimension_semantics = [#tpu.dimension_semantics<parallel>], iteration_bounds = array<i64: 2>, scalar_prefetch = 0 : i64, scratch_operands = 0 : i64, tpu.core_type = #tpu.core_type<tc>, window_params = [{transform_indices = @transform_0, window_bounds = array<i64: 8, 32>}, {pipeline_mode = #tpu.pipeline_mode<synchronous>, transform_indices = @transform_1, window_bounds = array<i64: 32, 64>}, {pipeline_mode = #tpu.pipeline_mode<synchronous>, transform_indices = @transform_2, window_bounds = array<i64: 1, 64>}, {pipeline_mode = #tpu.pipeline_mode<synchronous>, transform_indices = @transform_3, window_bounds = array<i64: 64, 64>}, {pipeline_mode = #tpu.pipeline_mode<synchronous>, transform_indices = @transform_4, window_bounds = array<i64: 1, 64>}, {pipeline_mode = #tpu.pipeline_mode<synchronous>, transform_indices = @transform_5, window_bounds = array<i64: 64, 64>}, {pipeline_mode = #tpu.pipeline_mode<synchronous>, transform_indices = @transform_6, window_bounds = array<i64: 1, 64>}, {pipeline_mode = #tpu.pipeline_mode<synchronous>, transform_indices = @transform_7, window_bounds = array<i64: 64, 32>}, {pipeline_mode = #tpu.pipeline_mode<synchronous>, transform_indices = @transform_8, window_bounds = array<i64: 1, 32>}, {transform_indices = @transform_9, window_bounds = array<i64: 8, 32>}]} {
    %c0 = arith.constant 0 : index
    %c0_0 = arith.constant 0 : index
    %0 = vector.load %arg1[%c0, %c0_0] : memref<8x32xf32, #tpu.memory_space<vmem>>, vector<8x32xf32>
    %1 = arith.truncf %0 : vector<8x32xf32> to vector<8x32xbf16>
    %c0_1 = arith.constant 0 : index
    %c0_2 = arith.constant 0 : index
    %2 = vector.load %arg2[%c0_1, %c0_2] : memref<32x64xbf16, #tpu.memory_space<vmem>>, vector<32x64xbf16>
    %cst = arith.constant dense<0.000000e+00> : vector<8x64xf32>
    %3 = tpu.matmul %1, %2, %cst {dimension_numbers = #tpu.dot_dimension_numbers<[1], [0], [0], [1], [0, 0, 1, 1], [], []>} : vector<8x32xbf16>, vector<32x64xbf16>, vector<8x64xf32> -> vector<8x64xf32>
    %c0_3 = arith.constant 0 : index
    %c0_4 = arith.constant 0 : index
    %4 = vector.load %arg3[%c0_3, %c0_4] : memref<1x64xf32, #tpu.memory_space<vmem>>, vector<1x64xf32>
    %5 = vector.broadcast %4 : vector<1x64xf32> to vector<8x64xf32>
    %6 = arith.addf %3, %5 : vector<8x64xf32>
    %cst_5 = arith.constant 0.000000e+00 : f32
    %7 = vector.broadcast %cst_5 : f32 to vector<8x64xf32>
    %8 = arith.maximumf %6, %7 : vector<8x64xf32>
    %9 = arith.truncf %8 : vector<8x64xf32> to vector<8x64xbf16>
    %c0_6 = arith.constant 0 : index
    %c0_7 = arith.constant 0 : index
    %10 = vector.load %arg4[%c0_6, %c0_7] : memref<64x64xbf16, #tpu.memory_space<vmem>>, vector<64x64xbf16>
    %cst_8 = arith.constant dense<0.000000e+00> : vector<8x64xf32>
    %11 = tpu.matmul %9, %10, %cst_8 {dimension_numbers = #tpu.dot_dimension_numbers<[1], [0], [0], [1], [0, 0, 1, 1], [], []>} : vector<8x64xbf16>, vector<64x64xbf16>, vector<8x64xf32> -> vector<8x64xf32>
    %c0_9 = arith.constant 0 : index
    %c0_10 = arith.constant 0 : index
    %12 = vector.load %arg5[%c0_9, %c0_10] : memref<1x64xf32, #tpu.memory_space<vmem>>, vector<1x64xf32>
    %13 = vector.broadcast %12 : vector<1x64xf32> to vector<8x64xf32>
    %14 = arith.addf %11, %13 : vector<8x64xf32>
    %cst_11 = arith.constant 0.000000e+00 : f32
    %15 = vector.broadcast %cst_11 : f32 to vector<8x64xf32>
    %16 = arith.maximumf %14, %15 : vector<8x64xf32>
    %17 = arith.truncf %16 : vector<8x64xf32> to vector<8x64xbf16>
    %c0_12 = arith.constant 0 : index
    %c0_13 = arith.constant 0 : index
    %18 = vector.load %arg6[%c0_12, %c0_13] : memref<64x64xbf16, #tpu.memory_space<vmem>>, vector<64x64xbf16>
    %cst_14 = arith.constant dense<0.000000e+00> : vector<8x64xf32>
    %19 = tpu.matmul %17, %18, %cst_14 {dimension_numbers = #tpu.dot_dimension_numbers<[1], [0], [0], [1], [0, 0, 1, 1], [], []>} : vector<8x64xbf16>, vector<64x64xbf16>, vector<8x64xf32> -> vector<8x64xf32>
    %c0_15 = arith.constant 0 : index
    %c0_16 = arith.constant 0 : index
    %20 = vector.load %arg7[%c0_15, %c0_16] : memref<1x64xf32, #tpu.memory_space<vmem>>, vector<1x64xf32>
    %21 = vector.broadcast %20 : vector<1x64xf32> to vector<8x64xf32>
    %22 = arith.addf %19, %21 : vector<8x64xf32>
    %cst_17 = arith.constant 0.000000e+00 : f32
    %23 = vector.broadcast %cst_17 : f32 to vector<8x64xf32>
    %24 = arith.maximumf %22, %23 : vector<8x64xf32>
    %25 = arith.truncf %24 : vector<8x64xf32> to vector<8x64xbf16>
    %c0_18 = arith.constant 0 : index
    %c0_19 = arith.constant 0 : index
    %26 = vector.load %arg8[%c0_18, %c0_19] : memref<64x32xbf16, #tpu.memory_space<vmem>>, vector<64x32xbf16>
    %cst_20 = arith.constant dense<0.000000e+00> : vector<8x32xf32>
    %27 = tpu.matmul %25, %26, %cst_20 {dimension_numbers = #tpu.dot_dimension_numbers<[1], [0], [0], [1], [0, 0, 1, 1], [], []>} : vector<8x64xbf16>, vector<64x32xbf16>, vector<8x32xf32> -> vector<8x32xf32>
    %c0_21 = arith.constant 0 : index
    %c0_22 = arith.constant 0 : index
    %28 = vector.load %arg9[%c0_21, %c0_22] : memref<1x32xf32, #tpu.memory_space<vmem>>, vector<1x32xf32>
    %29 = vector.broadcast %28 : vector<1x32xf32> to vector<8x32xf32>
    %30 = arith.addf %27, %29 : vector<8x32xf32>
    %c0_23 = arith.constant 0 : index
    %c0_24 = arith.constant 0 : index
    %31 = vector.load %arg10[%c0_23, %c0_24] : memref<8x32xf32, #tpu.memory_space<vmem>>, vector<8x32xf32>
    tpu.vector_store %arg10[%c0_23, %c0_24], %30 {strides = array<i32>} : memref<8x32xf32, #tpu.memory_space<vmem>>, vector<8x32xf32>,
    return
  }
  func.func @transform_0(%arg0: i32) -> (i32, i32) {
    %c0_i32 = arith.constant 0 : i32
    %c0_i32_0 = arith.constant 0 : i32
    return %arg0, %c0_i32 : i32, i32
  }
  func.func @transform_1(%arg0: i32) -> (i32, i32) {
    %c0_i32 = arith.constant 0 : i32
    %c0_i32_0 = arith.constant 0 : i32
    %c0_i32_1 = arith.constant 0 : i32
    return %c0_i32, %c0_i32_0 : i32, i32
  }
  func.func @transform_2(%arg0: i32) -> (i32, i32) {
    %c0_i32 = arith.constant 0 : i32
    %c0_i32_0 = arith.constant 0 : i32
    %c0_i32_1 = arith.constant 0 : i32
    return %c0_i32, %c0_i32_0 : i32, i32
  }
  func.func @transform_3(%arg0: i32) -> (i32, i32) {
    %c0_i32 = arith.constant 0 : i32
    %c0_i32_0 = arith.constant 0 : i32
    %c0_i32_1 = arith.constant 0 : i32
    return %c0_i32, %c0_i32_0 : i32, i32
  }
  func.func @transform_4(%arg0: i32) -> (i32, i32) {
    %c0_i32 = arith.constant 0 : i32
    %c0_i32_0 = arith.constant 0 : i32
    %c0_i32_1 = arith.constant 0 : i32
    return %c0_i32, %c0_i32_0 : i32, i32
  }
  func.func @transform_5(%arg0: i32) -> (i32, i32) {
    %c0_i32 = arith.constant 0 : i32
    %c0_i32_0 = arith.constant 0 : i32
    %c0_i32_1 = arith.constant 0 : i32
    return %c0_i32, %c0_i32_0 : i32, i32
  }
  func.func @transform_6(%arg0: i32) -> (i32, i32) {
    %c0_i32 = arith.constant 0 : i32
    %c0_i32_0 = arith.constant 0 : i32
    %c0_i32_1 = arith.constant 0 : i32
    return %c0_i32, %c0_i32_0 : i32, i32
  }
  func.func @transform_7(%arg0: i32) -> (i32, i32) {
    %c0_i32 = arith.constant 0 : i32
    %c0_i32_0 = arith.constant 0 : i32
    %c0_i32_1 = arith.constant 0 : i32
    return %c0_i32, %c0_i32_0 : i32, i32
  }
  func.func @transform_8(%arg0: i32) -> (i32, i32) {
    %c0_i32 = arith.constant 0 : i32
    %c0_i32_0 = arith.constant 0 : i32
    %c0_i32_1 = arith.constant 0 : i32
    return %c0_i32, %c0_i32_0 : i32, i32
  }
  func.func @transform_9(%arg0: i32) -> (i32, i32) {
    %c0_i32 = arith.constant 0 : i32
    %c0_i32_0 = arith.constant 0 : i32
    return %arg0, %c0_i32 : i32, i32
  }
}

</mosaic_0001>

<llo_original>
// kernel: tpu_custom_call.1
$region0: #{tpu_custom_call.1}
  #allocation0 [shape = 'u32[]', space=smem, size = 0x4, offset = 0x4, fixed_abs, tag = 'smem constant byte address 0x4 - core index']
  #allocation1 [shape = 'u32[144,128]{1,0:T(1,128)}', space=vmem, size = 0x12000, scoped, tag = 'internal scratch']
  %s0 = inlined_call_operand.hbm [shape: f32[10,32], index: 0, kind: input, shape index: {}]
  %s1 = inlined_call_operand.hbm [shape: bf16[32,64], index: 1, kind: input, shape index: {}]
  %s2 = inlined_call_operand.vmem [shape: f32[1,64], index: 2, kind: input, shape index: {}]
  %s3 = inlined_call_operand.vmem [shape: bf16[64,64], index: 3, kind: input, shape index: {}]
  %s4 = inlined_call_operand.vmem [shape: f32[1,64], index: 4, kind: input, shape index: {}]
  %s5 = inlined_call_operand.vmem [shape: bf16[64,64], index: 5, kind: input, shape index: {}]
  %s6 = inlined_call_operand.vmem [shape: f32[1,64], index: 6, kind: input, shape index: {}]
  %s7 = inlined_call_operand.vmem [shape: bf16[64,32], index: 7, kind: input, shape index: {}]
  %s8 = inlined_call_operand.vmem [shape: f32[1,32], index: 8, kind: input, shape index: {}]
  %s9 = inlined_call_operand.hbm [shape: f32[10,32], index: 9, kind: output, shape index: {}]
  %s10 = sld [smem:[#allocation0]]
  $region77: #{tpu_custom_call.1} parent=0
    _
  %s12 = ssub.s32 1, %s10
  %s13 = scalar_select 0, %s12, %s10
  $region1: #{tpu_custom_call.1} parent=0
    #allocation2 [shape = 'u8[8192]{0}', space=vmem, size = 0x2000, scoped, tag = 'input window, operand 0']
    #allocation3 [shape = 's32[2]{0}', space=sflag, size = 0x8, scoped, tag = 'scoped memory for tpu_custom_call.1']
    #allocation4 [shape = 's32[2]{0}', space=sflag, size = 0x8, scoped, tag = 'scoped memory for tpu_custom_call.1']
    #allocation5 [shape = 'u8[8192]{0}', space=vmem, size = 0x2000, scoped, tag = 'input window, operand 1, single buffered']
    #allocation6 [shape = 's32[1]{0}', space=sflag, size = 0x4, scoped, tag = 'scoped memory for tpu_custom_call.1']
    #allocation7 [shape = 'u8[8192]{0}', space=vmem, size = 0x2000, scoped, tag = 'output window, operand 0']
    %14 = vsyncpa [#allocation3], 0
    %s15 = scalar_lea.sflag [#allocation3], 1
    %16 = vsyncpa %s15, 0
    %17 = vsyncpa [#allocation6], 0
    %18 = vsyncpa [#allocation4], 0
    %s19 = scalar_lea.sflag [#allocation4], 1
    %20 = vsyncpa %s19, 0
    loop: start=0, step=1, limit=4
    $region2: #{tpu_custom_call.1} parent=1 // loop_pre_header
      _
    $region3: #{tpu_custom_call.1} parent=1 // loop_header
      %s22 = sphi 0, %s26
      %p23 = scmp.ge.s32.totalorder %s22, 4
      %s32 = sphi 0, %s34
      %s35 = sphi 0, %s32
      %s36 = sphi 0, %s35
      %s52 = sphi 0, %s36
      %s56 = sphi 0, %s56
      %s58 = sphi 0, %s56
      %s59 = sphi 0, %s58
      %s73 = sphi 0, %s59
      %s77 = sphi 0, %s77
      %s79 = sphi 0, %s77
      %s80 = sphi 0, %s79
      %s94 = sphi 0, %s80
      %s98 = sphi 0, %s98
      %s100 = sphi 0, %s98
      %s101 = sphi 0, %s100
      %s115 = sphi 0, %s101
      %s119 = sphi 0, %s119
      %s121 = sphi 0, %s119
      %s122 = sphi 0, %s121
      %s136 = sphi 0, %s122
      %s140 = sphi 0, %s140
      %s142 = sphi 0, %s140
      %s143 = sphi 0, %s142
      %s157 = sphi 0, %s143
      %s161 = sphi 0, %s161
      %s163 = sphi 0, %s161
      %s164 = sphi 0, %s163
      %s178 = sphi 0, %s164
      %s182 = sphi 0, %s182
      %s184 = sphi 0, %s182
      %s185 = sphi 0, %s184
      %s199 = sphi 0, %s185
      %s203 = sphi 0, %s203
      %s205 = sphi 0, %s203
      %s206 = sphi 0, %s205
      %s220 = sphi 0, %s206
      %s226 = sphi 0, %s228
      %s229 = sphi 0, %s226
      %s230 = sphi 0, %s229
      %s246 = sphi 0, %s230
    $region4: #{tpu_custom_call.1} parent=1 // loop_header_branch
      %25 = sbr.rel (%p23) target = $region8
    $region5: #{tpu_custom_call.1} parent=1 // loop_body
      %s27 = ssub.s32 %s22, 1
      %s28 = ssub.s32 %s22, 2
      %s29 = sadd.s32 %s22, 1
      %s30 = ssub.s32 %s22, %s29
      %p31 = scmp.eq.s32.totalorder %s30, 0
      %s33 = sadd.s32 %s32, 1
      %s34 = scalar_select %p31, %s32, %s33
      %p37 = pneg %p31
      %p38 = scmp.eq.s32.totalorder %s22, 1
      %p39 = por %p37, %p38
      %p40 = scmp.ne.s32.totalorder %s32, %s35
      %p41 = scmp.eq.s32.totalorder %s22, 0
      %p42 = por %p40, %p41
      %p43 = scmp.ne.s32.totalorder %s32, %s35
      %p44 = scmp.eq.s32.totalorder %s27, 1
      %p45 = por %p43, %p44
      %p46 = scmp.ne.s32.totalorder %s35, %s36
      %p47 = scmp.eq.s32.totalorder %s27, 0
      %p48 = por %p46, %p47
      %p49 = scmp.ne.s32.totalorder %s35, %s36
      %p50 = scmp.eq.s32.totalorder %s28, 1
      %p51 = por %p49, %p50
      %p53 = scmp.ne.s32.totalorder %s36, %s52
      %p54 = scmp.eq.s32.totalorder %s28, 0
      %p55 = por %p53, %p54
      %s57 = sadd.s32 %s56, 1
      %p60 = scmp.eq.s32.totalorder %s22, 1
      %p61 = scmp.ne.s32.totalorder %s56, %s58
      %p62 = scmp.eq.s32.totalorder %s22, 0
      %p63 = por %p61, %p62
      %p64 = scmp.ne.s32.totalorder %s56, %s58
      %p65 = scmp.eq.s32.totalorder %s27, 1
      %p66 = por %p64, %p65
      %p67 = scmp.ne.s32.totalorder %s58, %s59
      %p68 = scmp.eq.s32.totalorder %s27, 0
      %p69 = por %p67, %p68
      %p70 = scmp.ne.s32.totalorder %s58, %s59
      %p71 = scmp.eq.s32.totalorder %s28, 1
      %p72 = por %p70, %p71
      %p74 = scmp.ne.s32.totalorder %s59, %s73
      %p75 = scmp.eq.s32.totalorder %s28, 0
      %p76 = por %p74, %p75
      %s78 = sadd.s32 %s77, 1
      %p81 = scmp.eq.s32.totalorder %s22, 1
      %p82 = scmp.ne.s32.totalorder %s77, %s79
      %p83 = scmp.eq.s32.totalorder %s22, 0
      %p84 = por %p82, %p83
      %p85 = scmp.ne.s32.totalorder %s77, %s79
      %p86 = scmp.eq.s32.totalorder %s27, 1
      %p87 = por %p85, %p86
      %p88 = scmp.ne.s32.totalorder %s79, %s80
      %p89 = scmp.eq.s32.totalorder %s27, 0
      %p90 = por %p88, %p89
      %p91 = scmp.ne.s32.totalorder %s79, %s80
      %p92 = scmp.eq.s32.totalorder %s28, 1
      %p93 = por %p91, %p92
      %p95 = scmp.ne.s32.totalorder %s80, %s94
      %p96 = scmp.eq.s32.totalorder %s28, 0
      %p97 = por %p95, %p96
      %s99 = sadd.s32 %s98, 1
      %p102 = scmp.eq.s32.totalorder %s22, 1
      %p103 = scmp.ne.s32.totalorder %s98, %s100
      %p104 = scmp.eq.s32.totalorder %s22, 0
      %p105 = por %p103, %p104
      %p106 = scmp.ne.s32.totalorder %s98, %s100
      %p107 = scmp.eq.s32.totalorder %s27, 1
      %p108 = por %p106, %p107
      %p109 = scmp.ne.s32.totalorder %s100, %s101
      %p110 = scmp.eq.s32.totalorder %s27, 0
      %p111 = por %p109, %p110
      %p112 = scmp.ne.s32.totalorder %s100, %s101
      %p113 = scmp.eq.s32.totalorder %s28, 1
      %p114 = por %p112, %p113
      %p116 = scmp.ne.s32.totalorder %s101, %s115
      %p117 = scmp.eq.s32.totalorder %s28, 0
      %p118 = por %p116, %p117
      %s120 = sadd.s32 %s119, 1
      %p123 = scmp.eq.s32.totalorder %s22, 1
      %p124 = scmp.ne.s32.totalorder %s119, %s121
      %p125 = scmp.eq.s32.totalorder %s22, 0
      %p126 = por %p124, %p125
      %p127 = scmp.ne.s32.totalorder %s119, %s121
      %p128 = scmp.eq.s32.totalorder %s27, 1
      %p129 = por %p127, %p128
      %p130 = scmp.ne.s32.totalorder %s121, %s122
      %p131 = scmp.eq.s32.totalorder %s27, 0
      %p132 = por %p130, %p131
      %p133 = scmp.ne.s32.totalorder %s121, %s122
      %p134 = scmp.eq.s32.totalorder %s28, 1
      %p135 = por %p133, %p134
      %p137 = scmp.ne.s32.totalorder %s122, %s136
      %p138 = scmp.eq.s32.totalorder %s28, 0
      %p139 = por %p137, %p138
      %s141 = sadd.s32 %s140, 1
      %p144 = scmp.eq.s32.totalorder %s22, 1
      %p145 = scmp.ne.s32.totalorder %s140, %s142
      %p146 = scmp.eq.s32.totalorder %s22, 0
      %p147 = por %p145, %p146
      %p148 = scmp.ne.s32.totalorder %s140, %s142
      %p149 = scmp.eq.s32.totalorder %s27, 1
      %p150 = por %p148, %p149
      %p151 = scmp.ne.s32.totalorder %s142, %s143
      %p152 = scmp.eq.s32.totalorder %s27, 0
      %p153 = por %p151, %p152
      %p154 = scmp.ne.s32.totalorder %s142, %s143
      %p155 = scmp.eq.s32.totalorder %s28, 1
      %p156 = por %p154, %p155
      %p158 = scmp.ne.s32.totalorder %s143, %s157
      %p159 = scmp.eq.s32.totalorder %s28, 0
      %p160 = por %p158, %p159
      %s162 = sadd.s32 %s161, 1
      %p165 = scmp.eq.s32.totalorder %s22, 1
      %p166 = scmp.ne.s32.totalorder %s161, %s163
      %p167 = scmp.eq.s32.totalorder %s22, 0
      %p168 = por %p166, %p167
      %p169 = scmp.ne.s32.totalorder %s161, %s163
      %p170 = scmp.eq.s32.totalorder %s27, 1
      %p171 = por %p169, %p170
      %p172 = scmp.ne.s32.totalorder %s163, %s164
      %p173 = scmp.eq.s32.totalorder %s27, 0
      %p174 = por %p172, %p173
      %p175 = scmp.ne.s32.totalorder %s163, %s164
      %p176 = scmp.eq.s32.totalorder %s28, 1
      %p177 = por %p175, %p176
      %p179 = scmp.ne.s32.totalorder %s164, %s178
      %p180 = scmp.eq.s32.totalorder %s28, 0
      %p181 = por %p179, %p180
      %s183 = sadd.s32 %s182, 1
      %p186 = scmp.eq.s32.totalorder %s22, 1
      %p187 = scmp.ne.s32.totalorder %s182, %s184
      %p188 = scmp.eq.s32.totalorder %s22, 0
      %p189 = por %p187, %p188
      %p190 = scmp.ne.s32.totalorder %s182, %s184
      %p191 = scmp.eq.s32.totalorder %s27, 1
      %p192 = por %p190, %p191
      %p193 = scmp.ne.s32.totalorder %s184, %s185
      %p194 = scmp.eq.s32.totalorder %s27, 0
      %p195 = por %p193, %p194
      %p196 = scmp.ne.s32.totalorder %s184, %s185
      %p197 = scmp.eq.s32.totalorder %s28, 1
      %p198 = por %p196, %p197
      %p200 = scmp.ne.s32.totalorder %s185, %s199
      %p201 = scmp.eq.s32.totalorder %s28, 0
      %p202 = por %p200, %p201
      %s204 = sadd.s32 %s203, 1
      %p207 = scmp.eq.s32.totalorder %s22, 1
      %p208 = scmp.ne.s32.totalorder %s203, %s205
      %p209 = scmp.eq.s32.totalorder %s22, 0
      %p210 = por %p208, %p209
      %p211 = scmp.ne.s32.totalorder %s203, %s205
      %p212 = scmp.eq.s32.totalorder %s27, 1
      %p213 = por %p211, %p212
      %p214 = scmp.ne.s32.totalorder %s205, %s206
      %p215 = scmp.eq.s32.totalorder %s27, 0
      %p216 = por %p214, %p215
      %p217 = scmp.ne.s32.totalorder %s205, %s206
      %p218 = scmp.eq.s32.totalorder %s28, 1
      %p219 = por %p217, %p218
      %p221 = scmp.ne.s32.totalorder %s206, %s220
      %p222 = scmp.eq.s32.totalorder %s28, 0
      %p223 = por %p221, %p222
      %s224 = ssub.s32 %s22, %s29
      %p225 = scmp.eq.s32.totalorder %s224, 0
      %s227 = sadd.s32 %s226, 1
      %s228 = scalar_select %p225, %s226, %s227
      %p231 = pneg %p225
      %p232 = scmp.eq.s32.totalorder %s22, 1
      %p233 = por %p231, %p232
      %p234 = scmp.ne.s32.totalorder %s226, %s229
      %p235 = scmp.eq.s32.totalorder %s22, 0
      %p236 = por %p234, %p235
      %p237 = scmp.ne.s32.totalorder %s226, %s229
      %p238 = scmp.eq.s32.totalorder %s27, 1
      %p239 = por %p237, %p238
      %p240 = scmp.ne.s32.totalorder %s229, %s230
      %p241 = scmp.eq.s32.totalorder %s27, 0
      %p242 = por %p240, %p241
      %p243 = scmp.ne.s32.totalorder %s229, %s230
      %p244 = scmp.eq.s32.totalorder %s28, 1
      %p245 = por %p243, %p244
      %p247 = scmp.ne.s32.totalorder %s230, %s246
      %p248 = scmp.eq.s32.totalorder %s28, 0
      %p249 = por %p247, %p248
      %p250 = scmp.le.s32.totalorder 1, %s22
      %p251 = scmp.lt.s32.totalorder %s22, 3
      %p252 = pnand %p250, %p251
      %p253 = pneg %p252
      // Predicated region
      $region9: #{tpu_custom_call.1} parent=5 // pred_check
        _
      $region10: #{tpu_custom_call.1} parent=5 // pred_check_branch
        %255 = sbr.rel (%p252) target = $region12
      $region11: #{tpu_custom_call.1} parent=5 // pred_region
        %s256 = ssub.s32 %s22, 1
        // Predicated region
        $region13: #{tpu_custom_call.1} parent=11 // pred_check
          %p257 = pneg %p69
        $region14: #{tpu_custom_call.1} parent=11 // pred_check_branch
          %259 = sbr.rel (%p257) target = $region16
        $region15: #{tpu_custom_call.1} parent=11 // pred_region
          %s261 = ssub.s32 256, 256
          %262 = vsyncadd [#allocation6], %s261
          %s263 = sshll.u32 [#allocation5], 4
          %s264 = int_to_ptr.vmem [resolvable:$true] %s263
          %269 = dma.hbm_to_vmem [thread:$0]  %s1, 256, %s264, [#allocation6], 64, 64, 4
        $region16: #{tpu_custom_call.1} parent=11 // pred_fallthru
          _
        // Predicated region
        $region17: #{tpu_custom_call.1} parent=11 // pred_check
          %p270 = pneg %p90
        $region18: #{tpu_custom_call.1} parent=11 // pred_check_branch
          %272 = sbr.rel (%p270) target = $region20
        $region19: #{tpu_custom_call.1} parent=11 // pred_region
          _
        $region20: #{tpu_custom_call.1} parent=11 // pred_fallthru
          _
        // Predicated region
        $region21: #{tpu_custom_call.1} parent=11 // pred_check
          %p273 = pneg %p111
        $region22: #{tpu_custom_call.1} parent=11 // pred_check_branch
          %275 = sbr.rel (%p273) target = $region24
        $region23: #{tpu_custom_call.1} parent=11 // pred_region
          _
        $region24: #{tpu_custom_call.1} parent=11 // pred_fallthru
          _
        // Predicated region
        $region25: #{tpu_custom_call.1} parent=11 // pred_check
          %p276 = pneg %p132
        $region26: #{tpu_custom_call.1} parent=11 // pred_check_branch
          %278 = sbr.rel (%p276) target = $region28
        $region27: #{tpu_custom_call.1} parent=11 // pred_region
          _
        $region28: #{tpu_custom_call.1} parent=11 // pred_fallthru
          _
        // Predicated region
        $region29: #{tpu_custom_call.1} parent=11 // pred_check
          %p279 = pneg %p153
        $region30: #{tpu_custom_call.1} parent=11 // pred_check_branch
          %281 = sbr.rel (%p279) target = $region32
        $region31: #{tpu_custom_call.1} parent=11 // pred_region
          _
        $region32: #{tpu_custom_call.1} parent=11 // pred_fallthru
          _
        // Predicated region
        $region33: #{tpu_custom_call.1} parent=11 // pred_check
          %p282 = pneg %p174
        $region34: #{tpu_custom_call.1} parent=11 // pred_check_branch
          %284 = sbr.rel (%p282) target = $region36
        $region35: #{tpu_custom_call.1} parent=11 // pred_region
          _
        $region36: #{tpu_custom_call.1} parent=11 // pred_fallthru
          _
        // Predicated region
        $region37: #{tpu_custom_call.1} parent=11 // pred_check
          %p285 = pneg %p195
        $region38: #{tpu_custom_call.1} parent=11 // pred_check_branch
          %287 = sbr.rel (%p285) target = $region40
        $region39: #{tpu_custom_call.1} parent=11 // pred_region
          _
        $region40: #{tpu_custom_call.1} parent=11 // pred_fallthru
          _
        // Predicated region
        $region41: #{tpu_custom_call.1} parent=11 // pred_check
          %p288 = pneg %p216
        $region42: #{tpu_custom_call.1} parent=11 // pred_check_branch
          %290 = sbr.rel (%p288) target = $region44
        $region43: #{tpu_custom_call.1} parent=11 // pred_region
          _
        $region44: #{tpu_custom_call.1} parent=11 // pred_fallthru
          _
      $region12: #{tpu_custom_call.1} parent=5 // pred_fallthru
        _
      %p291 = scmp.lt.s32.totalorder %s22, 2
      // Predicated region
      $region45: #{tpu_custom_call.1} parent=5 // pred_check
        %p292 = pneg %p291
      $region46: #{tpu_custom_call.1} parent=5 // pred_check_branch
        %294 = sbr.rel (%p292) target = $region48
      $region47: #{tpu_custom_call.1} parent=5 // pred_region
        // Predicated region
        $region49: #{tpu_custom_call.1} parent=47 // pred_check
          %p295 = pneg %p42
        $region50: #{tpu_custom_call.1} parent=47 // pred_check_branch
          %297 = sbr.rel (%p295) target = $region52
        $region51: #{tpu_custom_call.1} parent=47 // pred_region
          %s298 = sand.u32 %s32, 1
          %s299 = scalar_lea.sflag [#allocation3], %s298
          %s300 = sand.u32 %s32, 1
          %s301 = smul.addr %s300, 8
          %s302 = scalar_lea.vmem [#allocation2], %s301
          %s304 = ssub.s32 128, 128
          %305 = vsyncadd %s299, %s304
          %s306 = smul.addr %s22, 128
          %s307 = scalar_lea.hbm %s0, %s306
          %s309 = sshll.u32 %s302, 4
          %s310 = int_to_ptr.vmem [resolvable:$true] %s309
          %312 = dma.hbm_to_vmem [thread:$0]  %s307, 128, %s310, %s299
        $region52: #{tpu_custom_call.1} parent=47 // pred_fallthru
          _
      $region48: #{tpu_custom_call.1} parent=5 // pred_fallthru
        _
      %p313 = scmp.le.s32.totalorder 1, %s22
      %p314 = scmp.lt.s32.totalorder %s22, 3
      %p315 = pnand %p313, %p314
      %p316 = pneg %p315
      // Predicated region
      $region53: #{tpu_custom_call.1} parent=5 // pred_check
        _
      $region54: #{tpu_custom_call.1} parent=5 // pred_check_branch
        %318 = sbr.rel (%p315) target = $region56
      $region55: #{tpu_custom_call.1} parent=5 // pred_region
        %s319 = ssub.s32 %s22, 1
        %s320 = sand.u32 %s35, 1
        %s321 = scalar_lea.sflag [#allocation3], %s320
        %s322 = sand.u32 %s35, 1
        %s323 = smul.addr %s322, 8
        %s324 = scalar_lea.vmem [#allocation2], %s323
        // Predicated region
        $region57: #{tpu_custom_call.1} parent=55 // pred_check
          %p325 = pneg %p48
        $region58: #{tpu_custom_call.1} parent=55 // pred_check_branch
          %327 = sbr.rel (%p325) target = $region60
        $region59: #{tpu_custom_call.1} parent=55 // pred_region
          %328 = dma.done %s321, 128
        $region60: #{tpu_custom_call.1} parent=55 // pred_fallthru
          _
        // Predicated region
        $region61: #{tpu_custom_call.1} parent=55 // pred_check
          %p329 = pneg %p69
        $region62: #{tpu_custom_call.1} parent=55 // pred_check_branch
          %331 = sbr.rel (%p329) target = $region64
        $region63: #{tpu_custom_call.1} parent=55 // pred_region
          %332 = dma.done [#allocation6], 256
        $region64: #{tpu_custom_call.1} parent=55 // pred_fallthru
          _
        %s333 = sand.u32 %s35, 1
        %s334 = scalar_lea.sflag [#allocation3], %s333
        %s335 = sand.u32 %s35, 1
        %s336 = smul.addr %s335, 8
        %s337 = scalar_lea.vmem [#allocation2], %s336
        %p338 = pneg %p48
        %p339 = pneg %p45
        %p340 = pneg %p69
        %p341 = pneg %p66
        %p342 = pneg %p90
        %p343 = pneg %p87
        %p344 = pneg %p111
        %p345 = pneg %p108
        %p346 = pneg %p132
        %p347 = pneg %p129
        %p348 = pneg %p153
        %p349 = pneg %p150
        %p350 = pneg %p174
        %p351 = pneg %p171
        %p352 = pneg %p195
        %p353 = pneg %p192
        %p354 = pneg %p216
        %p355 = pneg %p213
        %p356 = pneg %p242
        %p357 = pneg %p239
        %s358 = sand.u32 %s229, 1
        %s359 = scalar_lea.sflag [#allocation4], %s358
        %s360 = sand.u32 %s229, 1
        %s361 = smul.addr %s360, 8
        %s362 = scalar_lea.vmem [#allocation7], %s361
        %v364 = vld [vmem:[%s324] sm:$0xff]
        %v365 = vpack.c.bf16 %v364, %v364
        %v366 = vld [vmem:[#allocation5] sm:$0xf]
        %v367 = vld [vmem:[#allocation5 + $0x4] sm:$0xf]
        %v368 = vld [vmem:[#allocation5 + $0x8] sm:$0xf]
        %v369 = vld [vmem:[#allocation5 + $0xc] sm:$0xf]
        %v370 = vld [vmem:[%s2] sm:$0x1]
        %v372 = vlaneseq
        %v373 = vshrl.u32 %v372, 7
        %v374 = vsub.s32 0, %v373
        %v375 = vrot.slane %v370, %v374
        %v381 = vunpack.c.l.b16 %v366
        %v382 = vunpack.c.l.b16 %v367
        %v383 = vunpack.c.l.b16 %v368
        %v384 = vunpack.c.l.b16 %v369
        %v385 = vpack.c.b16 %v382, %v381
        %v386 = vpack.c.b16 %v384, %v383
        %vm389 = vcmask 261120
        %v391 = vsel %vm389, %v365, 0
        %393 = vmatprep.subr.bf16.mxu0 0
        %394 = vmatpush1.bf16.msra.mxu0 %v385
        %395 = vmatprep.subr.bf16.mxu0 0
        %396 = vmatpush1.bf16.msra.mxu0 %v386
        %397 = vmatprep.subr.bf16.mxu0 0
        %398 = vmatpush1.bf16.msra.mxu0 0
        %399 = vmatprep.subr.bf16.mxu0 0
        %400 = vmatpush1.bf16.msra.mxu0 0
        %401 = vmatprep.subr.bf16.mxu0 0
        %402 = vmatpush1.bf16.msra.mxu0 0
        %403 = vmatprep.subr.bf16.mxu0 0
        %404 = vmatpush1.bf16.msra.mxu0 0
        %405 = vmatprep.subr.bf16.mxu0 0
        %406 = vmatpush1.bf16.msra.mxu0 0
        %407 = vmatprep.subr.bf16.mxu0 0
        %408 = vmatpush1.bf16.msra.mxu0 0
        %409 = vmatprep.subr.bf16.mxu0 0
        %410 = vmatpush1.bf16.msra.mxu0 0
        %411 = vmatprep.subr.bf16.mxu0 0
        %412 = vmatpush1.bf16.msra.mxu0 0
        %413 = vmatprep.subr.bf16.mxu0 0
        %414 = vmatpush1.bf16.msra.mxu0 0
        %415 = vmatprep.subr.bf16.mxu0 0
        %416 = vmatpush1.bf16.msra.mxu0 0
        %417 = vmatprep.subr.bf16.mxu0 0
        %418 = vmatpush1.bf16.msra.mxu0 0
        %419 = vmatprep.subr.bf16.mxu0 0
        %420 = vmatpush1.bf16.msra.mxu0 0
        %421 = vmatprep.subr.bf16.mxu0 0
        %422 = vmatpush1.bf16.msra.mxu0 0
        %423 = vmatprep.subr.bf16.mxu0 0
        %424 = vmatpush1.bf16.msra.mxu0 0
        %425 = vmatprep.mubr.bf16.mxu0 0
        %426 = vmatmul.mubr.bf16.gmra.mrb[0].mxu0 %v391
        %v427 = vpop.f32.mrb[0].mxu0
        %v428 = vadd.f32 %v375, %v427
        %v429 = vpop.f32.mrb[0].mxu0
        %v430 = vpop.f32.mrb[0].mxu0
        %v431 = vpop.f32.mrb[0].mxu0
        %432 = vdwg.mxu0
        %v433 = vmax.f32 %v428, 0.0
        %v434 = vpack.c.bf16 %v433, %v433
        %v435 = vld [vmem:[%s3] sm:$0xf]
        %v436 = vld [vmem:[%s3 + $0x4] sm:$0xf]
        %v437 = vld [vmem:[%s3 + $0x8] sm:$0xf]
        %v438 = vld [vmem:[%s3 + $0xc] sm:$0xf]
        %v439 = vld [vmem:[%s3 + $0x10] sm:$0xf]
        %v440 = vld [vmem:[%s3 + $0x14] sm:$0xf]
        %v441 = vld [vmem:[%s3 + $0x18] sm:$0xf]
        %v442 = vld [vmem:[%s3 + $0x1c] sm:$0xf]
        %v443 = vld [vmem:[%s4] sm:$0x1]
        %v445 = vlaneseq
        %v446 = vshrl.u32 %v445, 7
        %v447 = vsub.s32 0, %v446
        %v448 = vrot.slane %v443, %v447
        %v458 = vunpack.c.l.b16 %v435
        %v459 = vunpack.c.l.b16 %v436
        %v460 = vunpack.c.l.b16 %v437
        %v461 = vunpack.c.l.b16 %v438
        %v462 = vunpack.c.l.b16 %v439
        %v463 = vunpack.c.l.b16 %v440
        %v464 = vunpack.c.l.b16 %v441
        %v465 = vunpack.c.l.b16 %v442
        %v466 = vpack.c.b16 %v459, %v458
        %v467 = vpack.c.b16 %v461, %v460
        %v468 = vpack.c.b16 %v463, %v462
        %v469 = vpack.c.b16 %v465, %v464
        %vm474 = vcmask 523264
        %v476 = vsel %vm474, %v434, 0
        %478 = vmatprep.subr.bf16.mxu0 0
        %479 = vmatpush1.bf16.msra.mxu0 %v466
        %480 = vmatprep.subr.bf16.mxu0 0
        %481 = vmatpush1.bf16.msra.mxu0 %v467
        %482 = vmatprep.subr.bf16.mxu0 0
        %483 = vmatpush1.bf16.msra.mxu0 %v468
        %484 = vmatprep.subr.bf16.mxu0 0
        %485 = vmatpush1.bf16.msra.mxu0 %v469
        %486 = vmatprep.subr.bf16.mxu0 0
        %487 = vmatpush1.bf16.msra.mxu0 0
        %488 = vmatprep.subr.bf16.mxu0 0
        %489 = vmatpush1.bf16.msra.mxu0 0
        %490 = vmatprep.subr.bf16.mxu0 0
        %491 = vmatpush1.bf16.msra.mxu0 0
        %492 = vmatprep.subr.bf16.mxu0 0
        %493 = vmatpush1.bf16.msra.mxu0 0
        %494 = vmatprep.subr.bf16.mxu0 0
        %495 = vmatpush1.bf16.msra.mxu0 0
        %496 = vmatprep.subr.bf16.mxu0 0
        %497 = vmatpush1.bf16.msra.mxu0 0
        %498 = vmatprep.subr.bf16.mxu0 0
        %499 = vmatpush1.bf16.msra.mxu0 0
        %500 = vmatprep.subr.bf16.mxu0 0
        %501 = vmatpush1.bf16.msra.mxu0 0
        %502 = vmatprep.subr.bf16.mxu0 0
        %503 = vmatpush1.bf16.msra.mxu0 0
        %504 = vmatprep.subr.bf16.mxu0 0
        %505 = vmatpush1.bf16.msra.mxu0 0
        %506 = vmatprep.subr.bf16.mxu0 0
        %507 = vmatpush1.bf16.msra.mxu0 0
        %508 = vmatprep.subr.bf16.mxu0 0
        %509 = vmatpush1.bf16.msra.mxu0 0
        %510 = vmatprep.mubr.bf16.mxu0 0
        %511 = vmatmul.mubr.bf16.gmra.mrb[0].mxu0 %v476
        %v512 = vpop.f32.mrb[0].mxu0
        %v513 = vadd.f32 %v448, %v512
        %v514 = vpop.f32.mrb[0].mxu0
        %v515 = vpop.f32.mrb[0].mxu0
        %v516 = vpop.f32.mrb[0].mxu0
        %517 = vdwg.mxu0
        %v518 = vmax.f32 %v513, 0.0
        %v519 = vpack.c.bf16 %v518, %v518
        %v520 = vld [vmem:[%s5] sm:$0xf]
        %v521 = vld [vmem:[%s5 + $0x4] sm:$0xf]
        %v522 = vld [vmem:[%s5 + $0x8] sm:$0xf]
        %v523 = vld [vmem:[%s5 + $0xc] sm:$0xf]
        %v524 = vld [vmem:[%s5 + $0x10] sm:$0xf]
        %v525 = vld [vmem:[%s5 + $0x14] sm:$0xf]
        %v526 = vld [vmem:[%s5 + $0x18] sm:$0xf]
        %v527 = vld [vmem:[%s5 + $0x1c] sm:$0xf]
        %v528 = vld [vmem:[%s6] sm:$0x1]
        %v530 = vlaneseq
        %v531 = vshrl.u32 %v530, 7
        %v532 = vsub.s32 0, %v531
        %v533 = vrot.slane %v528, %v532
        %v543 = vunpack.c.l.b16 %v520
        %v544 = vunpack.c.l.b16 %v521
        %v545 = vunpack.c.l.b16 %v522
        %v546 = vunpack.c.l.b16 %v523
        %v547 = vunpack.c.l.b16 %v524
        %v548 = vunpack.c.l.b16 %v525
        %v549 = vunpack.c.l.b16 %v526
        %v550 = vunpack.c.l.b16 %v527
        %v551 = vpack.c.b16 %v544, %v543
        %v552 = vpack.c.b16 %v546, %v545
        %v553 = vpack.c.b16 %v548, %v547
        %v554 = vpack.c.b16 %v550, %v549
        %v560 = vsel %vm474, %v519, 0
        %562 = vmatprep.subr.bf16.mxu0 0
        %563 = vmatpush1.bf16.msra.mxu0 %v551
        %564 = vmatprep.subr.bf16.mxu0 0
        %565 = vmatpush1.bf16.msra.mxu0 %v552
        %566 = vmatprep.subr.bf16.mxu0 0
        %567 = vmatpush1.bf16.msra.mxu0 %v553
        %568 = vmatprep.subr.bf16.mxu0 0
        %569 = vmatpush1.bf16.msra.mxu0 %v554
        %570 = vmatprep.subr.bf16.mxu0 0
        %571 = vmatpush1.bf16.msra.mxu0 0
        %572 = vmatprep.subr.bf16.mxu0 0
        %573 = vmatpush1.bf16.msra.mxu0 0
        %574 = vmatprep.subr.bf16.mxu0 0
        %575 = vmatpush1.bf16.msra.mxu0 0
        %576 = vmatprep.subr.bf16.mxu0 0
        %577 = vmatpush1.bf16.msra.mxu0 0
        %578 = vmatprep.subr.bf16.mxu0 0
        %579 = vmatpush1.bf16.msra.mxu0 0
        %580 = vmatprep.subr.bf16.mxu0 0
        %581 = vmatpush1.bf16.msra.mxu0 0
        %582 = vmatprep.subr.bf16.mxu0 0
        %583 = vmatpush1.bf16.msra.mxu0 0
        %584 = vmatprep.subr.bf16.mxu0 0
        %585 = vmatpush1.bf16.msra.mxu0 0
        %586 = vmatprep.subr.bf16.mxu0 0
        %587 = vmatpush1.bf16.msra.mxu0 0
        %588 = vmatprep.subr.bf16.mxu0 0
        %589 = vmatpush1.bf16.msra.mxu0 0
        %590 = vmatprep.subr.bf16.mxu0 0
        %591 = vmatpush1.bf16.msra.mxu0 0
        %592 = vmatprep.subr.bf16.mxu0 0
        %593 = vmatpush1.bf16.msra.mxu0 0
        %594 = vmatprep.mubr.bf16.mxu0 0
        %595 = vmatmul.mubr.bf16.gmra.mrb[0].mxu0 %v560
        %v596 = vpop.f32.mrb[0].mxu0
        %v597 = vadd.f32 %v533, %v596
        %v598 = vpop.f32.mrb[0].mxu0
        %v599 = vpop.f32.mrb[0].mxu0
        %v600 = vpop.f32.mrb[0].mxu0
        %601 = vdwg.mxu0
        %v602 = vmax.f32 %v597, 0.0
        %v603 = vpack.c.bf16 %v602, %v602
        %v604 = vld [vmem:[%s7] sm:$0xf]
        %v605 = vld [vmem:[%s7 + $0x4] sm:$0xf]
        %v606 = vld [vmem:[%s7 + $0x8] sm:$0xf]
        %v607 = vld [vmem:[%s7 + $0xc] sm:$0xf]
        %v608 = vld [vmem:[%s7 + $0x10] sm:$0xf]
        %v609 = vld [vmem:[%s7 + $0x14] sm:$0xf]
        %v610 = vld [vmem:[%s7 + $0x18] sm:$0xf]
        %v611 = vld [vmem:[%s7 + $0x1c] sm:$0xf]
        %v612 = vld [vmem:[%s8] sm:$0x1]
        %v614 = vlaneseq
        %v615 = vshrl.u32 %v614, 7
        %v616 = vsub.s32 0, %v615
        %v617 = vrot.slane %v612, %v616
        %v627 = vunpack.c.l.b16 %v604
        %v628 = vunpack.c.l.b16 %v605
        %v629 = vunpack.c.l.b16 %v606
        %v630 = vunpack.c.l.b16 %v607
        %v631 = vunpack.c.l.b16 %v608
        %v632 = vunpack.c.l.b16 %v609
        %v633 = vunpack.c.l.b16 %v610
        %v634 = vunpack.c.l.b16 %v611
        %v635 = vpack.c.b16 %v628, %v627
        %v636 = vpack.c.b16 %v630, %v629
        %v637 = vpack.c.b16 %v632, %v631
        %v638 = vpack.c.b16 %v634, %v633
        %v644 = vsel %vm474, %v603, 0
        %646 = vmatprep.subr.bf16.mxu0 0
        %647 = vmatpush1.bf16.msra.mxu0 %v635
        %648 = vmatprep.subr.bf16.mxu0 0
        %649 = vmatpush1.bf16.msra.mxu0 %v636
        %650 = vmatprep.subr.bf16.mxu0 0
        %651 = vmatpush1.bf16.msra.mxu0 %v637
        %652 = vmatprep.subr.bf16.mxu0 0
        %653 = vmatpush1.bf16.msra.mxu0 %v638
        %654 = vmatprep.subr.bf16.mxu0 0
        %655 = vmatpush1.bf16.msra.mxu0 0
        %656 = vmatprep.subr.bf16.mxu0 0
        %657 = vmatpush1.bf16.msra.mxu0 0
        %658 = vmatprep.subr.bf16.mxu0 0
        %659 = vmatpush1.bf16.msra.mxu0 0
        %660 = vmatprep.subr.bf16.mxu0 0
        %661 = vmatpush1.bf16.msra.mxu0 0
        %662 = vmatprep.subr.bf16.mxu0 0
        %663 = vmatpush1.bf16.msra.mxu0 0
        %664 = vmatprep.subr.bf16.mxu0 0
        %665 = vmatpush1.bf16.msra.mxu0 0
        %666 = vmatprep.subr.bf16.mxu0 0
        %667 = vmatpush1.bf16.msra.mxu0 0
        %668 = vmatprep.subr.bf16.mxu0 0
        %669 = vmatpush1.bf16.msra.mxu0 0
        %670 = vmatprep.subr.bf16.mxu0 0
        %671 = vmatpush1.bf16.msra.mxu0 0
        %672 = vmatprep.subr.bf16.mxu0 0
        %673 = vmatpush1.bf16.msra.mxu0 0
        %674 = vmatprep.subr.bf16.mxu0 0
        %675 = vmatpush1.bf16.msra.mxu0 0
        %676 = vmatprep.subr.bf16.mxu0 0
        %677 = vmatpush1.bf16.msra.mxu0 0
        %678 = vmatprep.mubr.bf16.mxu0 0
        %679 = vmatmul.mubr.bf16.gmra.mrb[0].mxu0 %v644
        %v680 = vpop.f32.mrb[0].mxu0
        %v681 = vadd.f32 %v617, %v680
        %v682 = vpop.f32.mrb[0].mxu0
        %v683 = vpop.f32.mrb[0].mxu0
        %v684 = vpop.f32.mrb[0].mxu0
        %685 = vdwg.mxu0
        %686 = vst.msk [vmem:[%s362] sm:$0xff] %vm389, %v681
        %s687 = sand.u32 %s229, 1
        %s688 = scalar_lea.sflag [#allocation4], %s687
        %s689 = sand.u32 %s229, 1
        %s690 = smul.addr %s689, 8
        %s691 = scalar_lea.vmem [#allocation7], %s690
        // Predicated region
        $region65: #{tpu_custom_call.1} parent=55 // pred_check
          %p692 = pneg %p239
        $region66: #{tpu_custom_call.1} parent=55 // pred_check_branch
          %694 = sbr.rel (%p692) target = $region68
        $region67: #{tpu_custom_call.1} parent=55 // pred_region
          %s696 = ssub.s32 128, 128
          %697 = vsyncadd %s688, %s696
          %s698 = smul.addr %s27, 128
          %s699 = scalar_lea.hbm %s9, %s698
          %s701 = sshll.u32 %s691, 4
          %s702 = int_to_ptr.vmem [resolvable:$true] %s701
          %704 = dma.vmem_to_hbm [thread:$0]  %s702, 128, %s699, %s688
        $region68: #{tpu_custom_call.1} parent=55 // pred_fallthru
          _
      $region56: #{tpu_custom_call.1} parent=5 // pred_fallthru
        _
      %p705 = scmp.le.s32.totalorder 2, %s22
      // Predicated region
      $region69: #{tpu_custom_call.1} parent=5 // pred_check
        %p706 = pneg %p705
      $region70: #{tpu_custom_call.1} parent=5 // pred_check_branch
        %708 = sbr.rel (%p706) target = $region72
      $region71: #{tpu_custom_call.1} parent=5 // pred_region
        %s709 = ssub.s32 %s22, 2
        // Predicated region
        $region73: #{tpu_custom_call.1} parent=71 // pred_check
          %p710 = pneg %p245
        $region74: #{tpu_custom_call.1} parent=71 // pred_check_branch
          %712 = sbr.rel (%p710) target = $region76
        $region75: #{tpu_custom_call.1} parent=71 // pred_region
          %s713 = sand.u32 %s230, 1
          %s714 = scalar_lea.sflag [#allocation4], %s713
          %s715 = sand.u32 %s230, 1
          %s716 = smul.addr %s715, 8
          %s717 = scalar_lea.vmem [#allocation7], %s716
          %718 = dma.done %s714, 128
        $region76: #{tpu_custom_call.1} parent=71 // pred_fallthru
          _
      $region72: #{tpu_custom_call.1} parent=5 // pred_fallthru
        _
    $region6: #{tpu_custom_call.1} parent=1 // loop_footer
      %s26 = sadd.s32 1, %s22
    $region7: #{tpu_custom_call.1} parent=1 // loop_footer_branch
      %21 = sbr.rel target = $region3
    $region8: #{tpu_custom_call.1} parent=1 // loop_exit
      _
    %719 = vsyncpa [#allocation3], 1
    %s720 = scalar_lea.sflag [#allocation3], 1
    %721 = vsyncpa %s720, 1
    %722 = vsyncpa [#allocation6], 1
    %723 = vsyncpa [#allocation4], 1
    %s724 = scalar_lea.sflag [#allocation4], 1
    %725 = vsyncpa %s724, 1

</llo_original>
